<compile_context>
chip_gen: v5e
topology: v5e:2x2
jax: 0.10.0
libtpu: 0.0.40
codegen_flags: <defaults>
</compile_context>

<pallas_src>
import jax
import jax.numpy as jnp
from jax.experimental import pallas as pl
from jax.experimental.pallas import tpu as pltpu

_BN_EPS = 1e-5  # torch.nn.BatchNorm2d default


def _stats_kernel(x_ref, w_ref, sum_ref, sq_ref):
    """Accumulate per-channel sum / sum-of-squares of z = W @ x over spatial tiles.

    x_ref:   [nin, TN]   one batch's spatial tile (lane axis = pixels)
    w_ref:   [nout, nin] conv weight
    sum_ref: [nout, 1]   per-batch running sum   (output accumulator)
    sq_ref:  [nout, 1]   per-batch running sumsq (output accumulator)
    """
    t = pl.program_id(1)
    z = jnp.dot(w_ref[...], x_ref[...], preferred_element_type=jnp.float32)  # [nout, TN]
    s = jnp.sum(z, axis=1, keepdims=True)
    sq = jnp.sum(z * z, axis=1, keepdims=True)

    @pl.when(t == 0)
    def _init():
        sum_ref[...] = s
        sq_ref[...] = sq

    @pl.when(t != 0)
    def _acc():
        sum_ref[...] = sum_ref[...] + s
        sq_ref[...] = sq_ref[...] + sq


def _apply_kernel(x_ref, wf_ref, d_ref, o_ref):
    """out = relu(W_fold @ x + d): BN scale folded into W_fold, shift folded into d."""
    z = jnp.dot(wf_ref[...], x_ref[...], preferred_element_type=jnp.float32)  # [nout, TN]
    o_ref[...] = jnp.maximum(z + d_ref[...], 0.0).astype(o_ref.dtype)


def _pick_spatial_tile(hw_pad):
    # Largest 128-multiple tile (<= 1024) that evenly divides the padded pixel axis.
    for cand in (1024, 512, 256, 128):
        if hw_pad % cand == 0:
            return cand
    return 128


@jax.jit
def iid_mapping_bn_forward(x_nchw, conv_w, conv_b, bn_gamma, bn_beta):
    """x_nchw: [B, nin, H, W]; conv_w: [nout, nin, 1, 1]; conv_b/bn_*: [nout]."""
    B, nin, H, W = x_nchw.shape
    nout = conv_w.shape[0]
    HW = H * W
    HW_pad = -(-HW // 128) * 128           # lane-align the pixel axis
    TN = _pick_spatial_tile(HW_pad)
    n_tiles = HW_pad // TN

    x3d = x_nchw.reshape(B, nin, HW)       # free view: NCHW kept, no transpose
    if HW_pad != HW:
        x3d = jnp.pad(x3d, ((0, 0), (0, 0), (0, HW_pad - HW)))
    w2d = conv_w.reshape(nout, nin)

    itemsize = jnp.dtype(x_nchw.dtype).itemsize
    matmul_flops = 2 * B * HW_pad * nin * nout

    # ---- Pass 1: batch statistics of z = W @ x (conv bias only shifts the mean). ----
    sum_z, sq_z = pl.pallas_call(
        _stats_kernel,
        out_shape=(
            jax.ShapeDtypeStruct((B, nout, 1), jnp.float32),
            jax.ShapeDtypeStruct((B, nout, 1), jnp.float32),
        ),
        grid=(B, n_tiles),
        in_specs=[
            pl.BlockSpec((None, nin, TN), lambda b, t: (b, 0, t)),
            pl.BlockSpec((nout, nin), lambda b, t: (0, 0)),
        ],
        out_specs=(
            pl.BlockSpec((None, nout, 1), lambda b, t: (b, 0, 0)),
            pl.BlockSpec((None, nout, 1), lambda b, t: (b, 0, 0)),
        ),
        compiler_params=pltpu.CompilerParams(
            dimension_semantics=("parallel", "arbitrary")),
        cost_estimate=pl.CostEstimate(
            flops=matmul_flops,
            transcendentals=0,
            bytes_accessed=itemsize * B * nin * HW_pad + 4 * (nout * nin + 2 * B * nout)),
    )(x3d, w2d)

    # ---- Tiny per-channel math in XLA: fold BN into conv weight / offset. ----
    count = jnp.float32(B * HW)            # true pixel count (padded columns contribute 0)
    sum_c = jnp.sum(sum_z[:, :, 0], axis=0)
    sq_c = jnp.sum(sq_z[:, :, 0], axis=0)
    mean_z = sum_c / count
    var = jnp.maximum(sq_c / count - mean_z * mean_z, 0.0)  # biased batch var (what BN normalizes with)
    a = bn_gamma * jax.lax.rsqrt(var + _BN_EPS)             # gamma / sqrt(var + eps)
    w_fold = w2d * a[:, None]                                # fold BN scale into conv weight rows
    d = (bn_beta - mean_z * a).reshape(nout, 1)              # conv bias cancels in (y - mean_y)
    # TODO(synk): BatchNorm2d in train mode also updates running_mean/running_var
    # (unbiased var); emit (mean_z + conv_b, var * count / (count - 1)) if those side
    # effects are needed downstream.

    # ---- Pass 2: out = relu(W_fold @ x + d), lane-dense NCHW store, fully parallel. ----
    out3d = pl.pallas_call(
        _apply_kernel,
        out_shape=jax.ShapeDtypeStruct((B, nout, HW_pad), x_nchw.dtype),
        grid=(B, n_tiles),
        in_specs=[
            pl.BlockSpec((None, nin, TN), lambda b, t: (b, 0, t)),
            pl.BlockSpec((nout, nin), lambda b, t: (0, 0)),
            pl.BlockSpec((nout, 1), lambda b, t: (0, 0)),
        ],
        out_specs=pl.BlockSpec((None, nout, TN), lambda b, t: (b, 0, t)),
        compiler_params=pltpu.CompilerParams(
            dimension_semantics=("parallel", "parallel")),
        cost_estimate=pl.CostEstimate(
            flops=matmul_flops,
            transcendentals=0,
            bytes_accessed=itemsize * B * (nin + nout) * HW_pad + 4 * (nout * nin + nout)),
    )(x3d, w_fold, d)

    if HW_pad != HW:
        out3d = out3d[:, :, :HW]
    return out3d.reshape(B, nout, H, W)


def _reference_forward(x_nchw, conv_w, conv_b, bn_gamma, bn_beta):
    """Pure-JAX reference mirroring PyTorch Conv2d(1x1)+BatchNorm2d(train)+ReLU."""
    nout, nin = conv_w.shape[0], conv_w.shape[1]
    y = jnp.einsum("bchw,oc->bohw", x_nchw, conv_w.reshape(nout, nin))
    y = y + conv_b[None, :, None, None]
    mean = jnp.mean(y, axis=(0, 2, 3), keepdims=True)
    var = jnp.mean((y - mean) ** 2, axis=(0, 2, 3), keepdims=True)
    y = (y - mean) / jnp.sqrt(var + _BN_EPS)
    y = y * bn_gamma[None, :, None, None] + bn_beta[None, :, None, None]
    return jnp.maximum(y, 0.0)


if __name__ == "__main__":
    key = jax.random.PRNGKey(0)
    k_x, k_w, k_b = jax.random.split(key, 3)

    # Small shapes consistent with the module (NCHW input, 1x1 conv nin->nout).
    B, nin, nout, H, W = 2, 4, 8, 16, 16

    x = jax.random.normal(k_x, (B, nin, H, W), dtype=jnp.float32)

    # Deterministic synthetic parameters (Conv2d weight/bias; BN gamma=1, beta=0 as at init).
    bound = 1.0 / (nin ** 0.5)  # fan_in for a 1x1 kernel
    conv_w = jax.random.uniform(k_w, (nout, nin, 1, 1), minval=-bound, maxval=bound,
                                dtype=jnp.float32)
    conv_b = jax.random.uniform(k_b, (nout,), minval=-bound, maxval=bound, dtype=jnp.float32)
    bn_gamma = jnp.ones((nout,), dtype=jnp.float32)
    bn_beta = jnp.zeros((nout,), dtype=jnp.float32)

    out = jax.block_until_ready(iid_mapping_bn_forward(x, conv_w, conv_b, bn_gamma, bn_beta))
    ref = _reference_forward(x, conv_w, conv_b, bn_gamma, bn_beta)

    assert out.shape == (B, nout, H, W)
    assert jnp.allclose(out, ref, atol=1e-4, rtol=1e-4), "mismatch vs pure-JAX reference"

    print("KERNEL_OK")
</pallas_src>

<mosaic_0001>
module attributes {stable_mosaic.version = 11 : i64} {
  func.func @_stats_kernel(%arg0: i32, %arg1: i32, %arg2: memref<1x4x256xf32, #tpu.memory_space<vmem>>, %arg3: memref<8x4xf32, #tpu.memory_space<vmem>>, %arg4: memref<1x8x1xf32, #tpu.memory_space<vmem>>, %arg5: memref<1x8x1xf32, #tpu.memory_space<vmem>>) attributes {dimension_semantics = [#tpu.dimension_semantics<parallel>, #tpu.dimension_semantics<arbitrary>], iteration_bounds = array<i64: 2, 1>, scalar_prefetch = 0 : i64, scratch_operands = 0 : i64, tpu.core_type = #tpu.core_type<tc>, window_params = [{transform_indices = @transform_0, window_bounds = array<i64: 1, 4, 256>}, {pipeline_mode = #tpu.pipeline_mode<synchronous>, transform_indices = @transform_1, window_bounds = array<i64: 8, 4>}, {transform_indices = @transform_2, window_bounds = array<i64: 1, 8, 1>}, {transform_indices = @transform_3, window_bounds = array<i64: 1, 8, 1>}]} {
    %c0 = arith.constant 0 : index
    %c0_0 = arith.constant 0 : index
    %0 = vector.load %arg3[%c0, %c0_0] : memref<8x4xf32, #tpu.memory_space<vmem>>, vector<8x4xf32>
    %c0_1 = arith.constant 0 : index
    %c0_2 = arith.constant 0 : index
    %c0_3 = arith.constant 0 : index
    %1 = vector.load %arg2[%c0_1, %c0_2, %c0_3] : memref<1x4x256xf32, #tpu.memory_space<vmem>>, vector<1x4x256xf32>
    %2 = vector.shape_cast %1 : vector<1x4x256xf32> to vector<4x256xf32>
    %cst = arith.constant dense<0.000000e+00> : vector<8x256xf32>
    %3 = tpu.matmul %0, %2, %cst {dimension_numbers = #tpu.dot_dimension_numbers<[1], [0], [0], [1], [0, 0, 1, 1], [], []>} : vector<8x4xf32>, vector<4x256xf32>, vector<8x256xf32> -> vector<8x256xf32>
    %cst_4 = arith.constant dense<0.000000e+00> : vector<8xf32>
    %4 = vector.multi_reduction <add>, %3, %cst_4 [1] : vector<8x256xf32> to vector<8xf32>
    %5 = vector.shape_cast %4 : vector<8xf32> to vector<8x1xf32>
    %6 = arith.mulf %3, %3 : vector<8x256xf32>
    %cst_5 = arith.constant dense<0.000000e+00> : vector<8xf32>
    %7 = vector.multi_reduction <add>, %6, %cst_5 [1] : vector<8x256xf32> to vector<8xf32>
    %8 = vector.shape_cast %7 : vector<8xf32> to vector<8x1xf32>
    %c0_i32 = arith.constant 0 : i32
    %9 = arith.cmpi eq, %arg1, %c0_i32 : i32
    %10 = arith.extui %9 : i1 to i32
    %c0_i32_6 = arith.constant 0 : i32
    %11 = arith.cmpi ne, %10, %c0_i32_6 : i32
    scf.if %11 {
      %c0_9 = arith.constant 0 : index
      %c0_10 = arith.constant 0 : index
      %c0_11 = arith.constant 0 : index
      %15 = vector.load %arg4[%c0_9, %c0_10, %c0_11] : memref<1x8x1xf32, #tpu.memory_space<vmem>>, vector<1x8x1xf32>
      %16 = vector.shape_cast %15 : vector<1x8x1xf32> to vector<8x1xf32>
      %17 = vector.shape_cast %5 : vector<8x1xf32> to vector<1x8x1xf32>
      tpu.vector_store %arg4[%c0_9, %c0_10, %c0_11], %17 {strides = array<i32>} : memref<1x8x1xf32, #tpu.memory_space<vmem>>, vector<1x8x1xf32>,
      %c0_12 = arith.constant 0 : index
      %c0_13 = arith.constant 0 : index
      %c0_14 = arith.constant 0 : index
      %18 = vector.load %arg5[%c0_12, %c0_13, %c0_14] : memref<1x8x1xf32, #tpu.memory_space<vmem>>, vector<1x8x1xf32>
      %19 = vector.shape_cast %18 : vector<1x8x1xf32> to vector<8x1xf32>
      %20 = vector.shape_cast %8 : vector<8x1xf32> to vector<1x8x1xf32>
      tpu.vector_store %arg5[%c0_12, %c0_13, %c0_14], %20 {strides = array<i32>} : memref<1x8x1xf32, #tpu.memory_space<vmem>>, vector<1x8x1xf32>,
    } else {
    }
    %c0_i32_7 = arith.constant 0 : i32
    %12 = arith.cmpi ne, %arg1, %c0_i32_7 : i32
    %13 = arith.extui %12 : i1 to i32
    %c0_i32_8 = arith.constant 0 : i32
    %14 = arith.cmpi ne, %13, %c0_i32_8 : i32
    scf.if %14 {
      %c0_9 = arith.constant 0 : index
      %c0_10 = arith.constant 0 : index
      %c0_11 = arith.constant 0 : index
      %15 = vector.load %arg4[%c0_9, %c0_10, %c0_11] : memref<1x8x1xf32, #tpu.memory_space<vmem>>, vector<1x8x1xf32>
      %16 = vector.shape_cast %15 : vector<1x8x1xf32> to vector<8x1xf32>
      %17 = arith.addf %16, %5 : vector<8x1xf32>
      %c0_12 = arith.constant 0 : index
      %c0_13 = arith.constant 0 : index
      %c0_14 = arith.constant 0 : index
      %18 = vector.load %arg4[%c0_12, %c0_13, %c0_14] : memref<1x8x1xf32, #tpu.memory_space<vmem>>, vector<1x8x1xf32>
      %19 = vector.shape_cast %18 : vector<1x8x1xf32> to vector<8x1xf32>
      %20 = vector.shape_cast %17 : vector<8x1xf32> to vector<1x8x1xf32>
      tpu.vector_store %arg4[%c0_12, %c0_13, %c0_14], %20 {strides = array<i32>} : memref<1x8x1xf32, #tpu.memory_space<vmem>>, vector<1x8x1xf32>,
      %c0_15 = arith.constant 0 : index
      %c0_16 = arith.constant 0 : index
      %c0_17 = arith.constant 0 : index
      %21 = vector.load %arg5[%c0_15, %c0_16, %c0_17] : memref<1x8x1xf32, #tpu.memory_space<vmem>>, vector<1x8x1xf32>
      %22 = vector.shape_cast %21 : vector<1x8x1xf32> to vector<8x1xf32>
      %23 = arith.addf %22, %8 : vector<8x1xf32>
      %c0_18 = arith.constant 0 : index
      %c0_19 = arith.constant 0 : index
      %c0_20 = arith.constant 0 : index
      %24 = vector.load %arg5[%c0_18, %c0_19, %c0_20] : memref<1x8x1xf32, #tpu.memory_space<vmem>>, vector<1x8x1xf32>
      %25 = vector.shape_cast %24 : vector<1x8x1xf32> to vector<8x1xf32>
      %26 = vector.shape_cast %23 : vector<8x1xf32> to vector<1x8x1xf32>
      tpu.vector_store %arg5[%c0_18, %c0_19, %c0_20], %26 {strides = array<i32>} : memref<1x8x1xf32, #tpu.memory_space<vmem>>, vector<1x8x1xf32>,
    } else {
    }
    return
  }
  func.func @transform_0(%arg0: i32, %arg1: i32) -> (i32, i32, i32) {
    %c0_i32 = arith.constant 0 : i32
    %c0_i32_0 = arith.constant 0 : i32
    return %arg0, %c0_i32, %arg1 : i32, i32, i32
  }
  func.func @transform_1(%arg0: i32, %arg1: i32) -> (i32, i32) {
    %c0_i32 = arith.constant 0 : i32
    %c0_i32_0 = arith.constant 0 : i32
    %c0_i32_1 = arith.constant 0 : i32
    return %c0_i32, %c0_i32_0 : i32, i32
  }
  func.func @transform_2(%arg0: i32, %arg1: i32) -> (i32, i32, i32) {
    %c0_i32 = arith.constant 0 : i32
    %c0_i32_0 = arith.constant 0 : i32
    %c0_i32_1 = arith.constant 0 : i32
    return %arg0, %c0_i32, %c0_i32_0 : i32, i32, i32
  }
  func.func @transform_3(%arg0: i32, %arg1: i32) -> (i32, i32, i32) {
    %c0_i32 = arith.constant 0 : i32
    %c0_i32_0 = arith.constant 0 : i32
    %c0_i32_1 = arith.constant 0 : i32
    return %arg0, %c0_i32, %c0_i32_0 : i32, i32, i32
  }
}

module attributes {stable_mosaic.version = 11 : i64} {
  func.func @_apply_kernel(%arg0: i32, %arg1: i32, %arg2: memref<1x4x256xf32, #tpu.memory_space<vmem>>, %arg3: memref<8x4xf32, #tpu.memory_space<vmem>>, %arg4: memref<8x1xf32, #tpu.memory_space<vmem>>, %arg5: memref<1x8x256xf32, #tpu.memory_space<vmem>>) attributes {dimension_semantics = [#tpu.dimension_semantics<parallel>, #tpu.dimension_semantics<parallel>], iteration_bounds = array<i64: 2, 1>, scalar_prefetch = 0 : i64, scratch_operands = 0 : i64, tpu.core_type = #tpu.core_type<tc>, window_params = [{transform_indices = @transform_0, window_bounds = array<i64: 1, 4, 256>}, {pipeline_mode = #tpu.pipeline_mode<synchronous>, transform_indices = @transform_1, window_bounds = array<i64: 8, 4>}, {pipeline_mode = #tpu.pipeline_mode<synchronous>, transform_indices = @transform_2, window_bounds = array<i64: 8, 1>}, {transform_indices = @transform_3, window_bounds = array<i64: 1, 8, 256>}]} {
    %c0 = arith.constant 0 : index
    %c0_0 = arith.constant 0 : index
    %0 = vector.load %arg3[%c0, %c0_0] : memref<8x4xf32, #tpu.memory_space<vmem>>, vector<8x4xf32>
    %c0_1 = arith.constant 0 : index
    %c0_2 = arith.constant 0 : index
    %c0_3 = arith.constant 0 : index
    %1 = vector.load %arg2[%c0_1, %c0_2, %c0_3] : memref<1x4x256xf32, #tpu.memory_space<vmem>>, vector<1x4x256xf32>
    %2 = vector.shape_cast %1 : vector<1x4x256xf32> to vector<4x256xf32>
    %cst = arith.constant dense<0.000000e+00> : vector<8x256xf32>
    %3 = tpu.matmul %0, %2, %cst {dimension_numbers = #tpu.dot_dimension_numbers<[1], [0], [0], [1], [0, 0, 1, 1], [], []>} : vector<8x4xf32>, vector<4x256xf32>, vector<8x256xf32> -> vector<8x256xf32>
    %c0_4 = arith.constant 0 : index
    %c0_5 = arith.constant 0 : index
    %4 = vector.load %arg4[%c0_4, %c0_5] : memref<8x1xf32, #tpu.memory_space<vmem>>, vector<8x1xf32>
    %5 = vector.broadcast %4 : vector<8x1xf32> to vector<8x256xf32>
    %6 = arith.addf %3, %5 : vector<8x256xf32>
    %cst_6 = arith.constant 0.000000e+00 : f32
    %7 = vector.broadcast %cst_6 : f32 to vector<8x256xf32>
    %8 = arith.maximumf %6, %7 : vector<8x256xf32>
    %c0_7 = arith.constant 0 : index
    %c0_8 = arith.constant 0 : index
    %c0_9 = arith.constant 0 : index
    %9 = vector.load %arg5[%c0_7, %c0_8, %c0_9] : memref<1x8x256xf32, #tpu.memory_space<vmem>>, vector<1x8x256xf32>
    %10 = vector.shape_cast %9 : vector<1x8x256xf32> to vector<8x256xf32>
    %11 = vector.shape_cast %8 : vector<8x256xf32> to vector<1x8x256xf32>
    tpu.vector_store %arg5[%c0_7, %c0_8, %c0_9], %11 {strides = array<i32>} : memref<1x8x256xf32, #tpu.memory_space<vmem>>, vector<1x8x256xf32>,
    return
  }
  func.func @transform_0(%arg0: i32, %arg1: i32) -> (i32, i32, i32) {
    %c0_i32 = arith.constant 0 : i32
    %c0_i32_0 = arith.constant 0 : i32
    return %arg0, %c0_i32, %arg1 : i32, i32, i32
  }
  func.func @transform_1(%arg0: i32, %arg1: i32) -> (i32, i32) {
    %c0_i32 = arith.constant 0 : i32
    %c0_i32_0 = arith.constant 0 : i32
    %c0_i32_1 = arith.constant 0 : i32
    return %c0_i32, %c0_i32_0 : i32, i32
  }
  func.func @transform_2(%arg0: i32, %arg1: i32) -> (i32, i32) {
    %c0_i32 = arith.constant 0 : i32
    %c0_i32_0 = arith.constant 0 : i32
    %c0_i32_1 = arith.constant 0 : i32
    return %c0_i32, %c0_i32_0 : i32, i32
  }
  func.func @transform_3(%arg0: i32, %arg1: i32) -> (i32, i32, i32) {
    %c0_i32 = arith.constant 0 : i32
    %c0_i32_0 = arith.constant 0 : i32
    return %arg0, %c0_i32, %arg1 : i32, i32, i32
  }
}

</mosaic_0001>

<llo_original>
// kernel: iid_mapping_bn_forward.2
$region0: #{iid_mapping_bn_forward.2}
  #allocation0 [shape = 'u32[]', space=smem, size = 0x4, offset = 0x4, fixed_abs, tag = 'smem constant byte address 0x4 - core index']
  #allocation1 [shape = 'u32[72,128]{1,0:T(1,128)}', space=vmem, size = 0x9000, scoped, tag = 'internal scratch']
  %s0 = inlined_call_operand.vmem [shape: f32[2,4,256], index: 0, kind: input, shape index: {}]
  %s1 = inlined_call_operand.vmem [shape: f32[8,4], index: 1, kind: input, shape index: {}]
  %s2 = inlined_call_operand.vmem [shape: f32[2,8,1], index: 2, kind: output, shape index: {0}]
  %s3 = inlined_call_operand.vmem [shape: f32[2,8,1], index: 3, kind: output, shape index: {1}]
  %4 = xla_tuple %s2, %s3
  %s5 = sld [smem:[#allocation0]]
  $region57: #{iid_mapping_bn_forward.2} parent=0
    _
  %s7 = ssub.s32 1, %s5
  %s8 = scalar_select 0, %s7, %s5
  loop: start=0, step=1, limit=4
  $region2: #{iid_mapping_bn_forward.2} parent=0 // loop_pre_header
    _
  $region3: #{iid_mapping_bn_forward.2} parent=0 // loop_header
    %s10 = sphi 0, %s14
    %p11 = scmp.ge.s32.totalorder %s10, 4
    %s17 = sphi 0, %s29
    %s18 = sphi 0, %s25
    %s19 = sphi 0, %s17
    %s20 = sphi 0, %s18
    %s21 = sphi 0, %s19
    %s22 = sphi 0, %s20
    %s34 = sphi 0, %s36
    %s37 = sphi 0, %s34
    %s38 = sphi 0, %s37
    %s54 = sphi 0, %s38
    %s58 = sphi 0, %s58
    %s60 = sphi 0, %s58
    %s61 = sphi 0, %s60
    %s75 = sphi 0, %s61
    %s81 = sphi 0, %s83
    %s84 = sphi 0, %s81
    %s85 = sphi 0, %s84
    %s101 = sphi 0, %s85
    %s107 = sphi 0, %s109
    %s110 = sphi 0, %s107
    %s111 = sphi 0, %s110
    %s127 = sphi 0, %s111
  $region4: #{iid_mapping_bn_forward.2} parent=0 // loop_header_branch
    %13 = sbr.rel (%p11) target = $region8
  $region5: #{iid_mapping_bn_forward.2} parent=0 // loop_body
    %s15 = ssub.s32 %s10, 1
    %s16 = ssub.s32 %s10, 2
    %s23 = sadd.s32 1, %s18
    %p24 = scmp.ge.s32.totalorder %s23, 1
    %s25 = scalar_select %p24, 0, %s23
    %s26 = sadd.s32 1, %s17
    %s27 = scalar_select %p24, %s26, %s17
    %p28 = scmp.ge.s32.totalorder %s27, 2
    %s29 = scalar_select %p28, 0, %s27
    %s30 = ssub.s32 %s17, %s29
    %s31 = ssub.s32 %s18, %s25
    %s32 = sor.u32 %s30, %s31
    %p33 = scmp.eq.s32.totalorder %s32, 0
    %s35 = sadd.s32 %s34, 1
    %s36 = scalar_select %p33, %s34, %s35
    %p39 = pneg %p33
    %p40 = scmp.eq.s32.totalorder %s10, 1
    %p41 = por %p39, %p40
    %p42 = scmp.ne.s32.totalorder %s34, %s37
    %p43 = scmp.eq.s32.totalorder %s10, 0
    %p44 = por %p42, %p43
    %p45 = scmp.ne.s32.totalorder %s34, %s37
    %p46 = scmp.eq.s32.totalorder %s15, 1
    %p47 = por %p45, %p46
    %p48 = scmp.ne.s32.totalorder %s37, %s38
    %p49 = scmp.eq.s32.totalorder %s15, 0
    %p50 = por %p48, %p49
    %p51 = scmp.ne.s32.totalorder %s37, %s38
    %p52 = scmp.eq.s32.totalorder %s16, 1
    %p53 = por %p51, %p52
    %p55 = scmp.ne.s32.totalorder %s38, %s54
    %p56 = scmp.eq.s32.totalorder %s16, 0
    %p57 = por %p55, %p56
    %s59 = sadd.s32 %s58, 1
    %p62 = scmp.eq.s32.totalorder %s10, 1
    %p63 = scmp.ne.s32.totalorder %s58, %s60
    %p64 = scmp.eq.s32.totalorder %s10, 0
    %p65 = por %p63, %p64
    %p66 = scmp.ne.s32.totalorder %s58, %s60
    %p67 = scmp.eq.s32.totalorder %s15, 1
    %p68 = por %p66, %p67
    %p69 = scmp.ne.s32.totalorder %s60, %s61
    %p70 = scmp.eq.s32.totalorder %s15, 0
    %p71 = por %p69, %p70
    %p72 = scmp.ne.s32.totalorder %s60, %s61
    %p73 = scmp.eq.s32.totalorder %s16, 1
    %p74 = por %p72, %p73
    %p76 = scmp.ne.s32.totalorder %s61, %s75
    %p77 = scmp.eq.s32.totalorder %s16, 0
    %p78 = por %p76, %p77
    %s79 = ssub.s32 %s17, %s29
    %p80 = scmp.eq.s32.totalorder %s79, 0
    %s82 = sadd.s32 %s81, 1
    %s83 = scalar_select %p80, %s81, %s82
    %p86 = pneg %p80
    %p87 = scmp.eq.s32.totalorder %s10, 1
    %p88 = por %p86, %p87
    %p89 = scmp.ne.s32.totalorder %s81, %s84
    %p90 = scmp.eq.s32.totalorder %s10, 0
    %p91 = por %p89, %p90
    %p92 = scmp.ne.s32.totalorder %s81, %s84
    %p93 = scmp.eq.s32.totalorder %s15, 1
    %p94 = por %p92, %p93
    %p95 = scmp.ne.s32.totalorder %s84, %s85
    %p96 = scmp.eq.s32.totalorder %s15, 0
    %p97 = por %p95, %p96
    %p98 = scmp.ne.s32.totalorder %s84, %s85
    %p99 = scmp.eq.s32.totalorder %s16, 1
    %p100 = por %p98, %p99
    %p102 = scmp.ne.s32.totalorder %s85, %s101
    %p103 = scmp.eq.s32.totalorder %s16, 0
    %p104 = por %p102, %p103
    %s105 = ssub.s32 %s17, %s29
    %p106 = scmp.eq.s32.totalorder %s105, 0
    %s108 = sadd.s32 %s107, 1
    %s109 = scalar_select %p106, %s107, %s108
    %p112 = pneg %p106
    %p113 = scmp.eq.s32.totalorder %s10, 1
    %p114 = por %p112, %p113
    %p115 = scmp.ne.s32.totalorder %s107, %s110
    %p116 = scmp.eq.s32.totalorder %s10, 0
    %p117 = por %p115, %p116
    %p118 = scmp.ne.s32.totalorder %s107, %s110
    %p119 = scmp.eq.s32.totalorder %s15, 1
    %p120 = por %p118, %p119
    %p121 = scmp.ne.s32.totalorder %s110, %s111
    %p122 = scmp.eq.s32.totalorder %s15, 0
    %p123 = por %p121, %p122
    %p124 = scmp.ne.s32.totalorder %s110, %s111
    %p125 = scmp.eq.s32.totalorder %s16, 1
    %p126 = por %p124, %p125
    %p128 = scmp.ne.s32.totalorder %s111, %s127
    %p129 = scmp.eq.s32.totalorder %s16, 0
    %p130 = por %p128, %p129
    %p131 = scmp.le.s32.totalorder 1, %s10
    %p132 = scmp.lt.s32.totalorder %s10, 3
    %p133 = pnand %p131, %p132
    %p134 = pneg %p133
    // Predicated region
    $region9: #{iid_mapping_bn_forward.2} parent=5 // pred_check
      _
    $region10: #{iid_mapping_bn_forward.2} parent=5 // pred_check_branch
      %136 = sbr.rel (%p133) target = $region12
    $region11: #{iid_mapping_bn_forward.2} parent=5 // pred_region
      %s137 = ssub.s32 %s10, 1
      // Predicated region
      $region13: #{iid_mapping_bn_forward.2} parent=11 // pred_check
        %p138 = pneg %p71
      $region14: #{iid_mapping_bn_forward.2} parent=11 // pred_check_branch
        %140 = sbr.rel (%p138) target = $region16
      $region15: #{iid_mapping_bn_forward.2} parent=11 // pred_region
        _
      $region16: #{iid_mapping_bn_forward.2} parent=11 // pred_fallthru
        _
    $region12: #{iid_mapping_bn_forward.2} parent=5 // pred_fallthru
      _
    %p141 = scmp.lt.s32.totalorder %s10, 2
    // Predicated region
    $region17: #{iid_mapping_bn_forward.2} parent=5 // pred_check
      %p142 = pneg %p141
    $region18: #{iid_mapping_bn_forward.2} parent=5 // pred_check_branch
      %144 = sbr.rel (%p142) target = $region20
    $region19: #{iid_mapping_bn_forward.2} parent=5 // pred_region
      // Predicated region
      $region21: #{iid_mapping_bn_forward.2} parent=19 // pred_check
        %p145 = pneg %p44
      $region22: #{iid_mapping_bn_forward.2} parent=19 // pred_check_branch
        %147 = sbr.rel (%p145) target = $region24
      $region23: #{iid_mapping_bn_forward.2} parent=19 // pred_region
        %s148 = smul.u32 2, %s18
        %p149 = scmp.lt.s32.totalorder %s17, 1
        %s150 = scalar_select %p149, %s17, 1
        %p151 = scmp.lt.s32.totalorder %s148, 1
        %s152 = scalar_select %p151, %s148, 1
        %s153 = smul.addr %s150, 2
        %s154 = sadd.s32 %s152, %s153
        %s155 = smul.addr %s154, 4
        %s156 = scalar_lea.vmem %s0, %s155
        %s157 = smul.u32 2, %s18
      $region24: #{iid_mapping_bn_forward.2} parent=19 // pred_fallthru
        _
    $region20: #{iid_mapping_bn_forward.2} parent=5 // pred_fallthru
      _
    %p158 = scmp.le.s32.totalorder 1, %s10
    %p159 = scmp.lt.s32.totalorder %s10, 3
    %p160 = pnand %p158, %p159
    %p161 = pneg %p160
    // Predicated region
    $region25: #{iid_mapping_bn_forward.2} parent=5 // pred_check
      _
    $region26: #{iid_mapping_bn_forward.2} parent=5 // pred_check_branch
      %163 = sbr.rel (%p160) target = $region28
    $region27: #{iid_mapping_bn_forward.2} parent=5 // pred_region
      %s164 = ssub.s32 %s10, 1
      %s165 = smul.u32 2, %s20
      %p166 = scmp.lt.s32.totalorder %s19, 1
      %s167 = scalar_select %p166, %s19, 1
      %p168 = scmp.lt.s32.totalorder %s165, 1
      %s169 = scalar_select %p168, %s165, 1
      %s170 = smul.addr %s167, 2
      %s171 = sadd.s32 %s169, %s170
      %s172 = smul.addr %s171, 4
      %s173 = scalar_lea.vmem %s0, %s172
      %p174 = pneg %p50
      %p175 = pneg %p47
      %p176 = pneg %p71
      %p177 = pneg %p68
      %p178 = pneg %p97
      %p179 = pneg %p94
      %p180 = scmp.lt.s32.totalorder %s19, 1
      %s181 = scalar_select %p180, %s19, 1
      %s182 = smul.addr %s181, 8
      %s183 = scalar_lea.vmem %s2, %s182
      %p184 = pneg %p123
      %p185 = pneg %p120
      %p186 = scmp.lt.s32.totalorder %s19, 1
      %s187 = scalar_select %p186, %s19, 1
      %s188 = smul.addr %s187, 8
      %s189 = scalar_lea.vmem %s3, %s188
      %s190 = smul.u32 2, %s20
      %p191 = scmp.lt.s32.totalorder %s19, 1
      %s192 = scalar_select %p191, %s19, 1
      %p193 = scmp.lt.s32.totalorder %s190, 1
      %s194 = scalar_select %p193, %s190, 1
      %s195 = smul.addr %s192, 2
      %s196 = sadd.s32 %s194, %s195
      %s197 = smul.addr %s196, 4
      %s198 = scalar_lea.vmem %s0, %s197
      %s199 = smul.u32 2, %s20
      %p200 = scmp.lt.s32.totalorder %s19, 1
      %s201 = scalar_select %p200, %s19, 1
      %s202 = smul.addr %s201, 8
      %s203 = scalar_lea.vmem %s2, %s202
      %p204 = scmp.lt.s32.totalorder %s19, 1
      %s205 = scalar_select %p204, %s19, 1
      %s206 = smul.addr %s205, 8
      %s207 = scalar_lea.vmem %s3, %s206
      %v208 = vld [vmem:[%s1] sm:$0xff]
      %v209 = vld [vmem:[%s198] sm:$0xff]
      %211 = vst [vmem:[#allocation1] ss:$2 sm:$0xff] %v209
      %v212 = vld.sshfl [vmem:[#allocation1] sm:$0xff pattern:$0x75316420]
      %v213 = vld.sshfl [vmem:[#allocation1 + $0x8] sm:$0xff pattern:$0x75316420]
      %vm214 = vcmask 31744
      %v216 = vsel %vm214, %v208, 0
      %vm218 = vcmask 1043456
      %v219 = vsel %vm218, %v212, 0
      %v221 = vsel %vm218, %v213, 0
      %223 = vmatpush.msra.mxu0 0.0
      %224 = vmatpush.msra.mxu0 0.0
      %225 = vmatpush.msra.mxu0 0.0
      %226 = vmatpush.msra.mxu0 0.0
      %227 = vmatpush.msra.mxu0 0.0
      %228 = vmatpush.msra.mxu0 0.0
      %229 = vmatpush.msra.mxu0 0.0
      %230 = vmatpush.msra.mxu0 0.0
      %231 = vmatpush.msra.mxu0 0.0
      %232 = vmatpush.msra.mxu0 0.0
      %233 = vmatpush.msra.mxu0 0.0
      %234 = vmatpush.msra.mxu0 0.0
      %235 = vmatpush.msra.mxu0 0.0
      %236 = vmatpush.msra.mxu0 0.0
      %237 = vmatpush.msra.mxu0 0.0
      %238 = vmatpush.msra.mxu0 %v219
      %239 = vmatmul.f32.gmra.mxu0 %v216
      %v240 = vpop.f32.mrf.mxu0
      %v241 = vadd.f32 0.0, %v240
      %242 = vdwg.mxu0
      %243 = vmatpush.msra.mxu0 0.0
      %244 = vmatpush.msra.mxu0 0.0
      %245 = vmatpush.msra.mxu0 0.0
      %246 = vmatpush.msra.mxu0 0.0
      %247 = vmatpush.msra.mxu0 0.0
      %248 = vmatpush.msra.mxu0 0.0
      %249 = vmatpush.msra.mxu0 0.0
      %250 = vmatpush.msra.mxu0 0.0
      %251 = vmatpush.msra.mxu0 0.0
      %252 = vmatpush.msra.mxu0 0.0
      %253 = vmatpush.msra.mxu0 0.0
      %254 = vmatpush.msra.mxu0 0.0
      %255 = vmatpush.msra.mxu0 0.0
      %256 = vmatpush.msra.mxu0 0.0
      %257 = vmatpush.msra.mxu0 0.0
      %258 = vmatpush.msra.mxu0 %v221
      %259 = vmatmul.f32.gmra.mxu0 %v216
      %v260 = vpop.f32.mrf.mxu0
      %v261 = vadd.f32 0.0, %v260
      %262 = vdwg.mxu0
      %v263 = vadd.f32 %v241, %v261
      %264 = vadd.xlane.f32.xlu0 %v263
      %v265 = vpop.xlane.xlu0 %264
      %v266 = vmul.f32 %v241, %v241
      %v267 = vmul.f32 %v261, %v261
      %v268 = vadd.f32 %v266, %v267
      %269 = vadd.xlane.f32.xlu0 %v268
      %v270 = vpop.xlane.xlu0 %269
      %p271 = scmp.eq.s32.totalorder %s20, 0
      // Predicated region
      $region29: #{iid_mapping_bn_forward.2} parent=27 // pred_check
        %p272 = pneg %p271
      $region30: #{iid_mapping_bn_forward.2} parent=27 // pred_check_branch
        %274 = sbr.rel (%p272) target = $region32
      $region31: #{iid_mapping_bn_forward.2} parent=27 // pred_region
        %vm275 = vcmask 7168
        %276 = vst.msk [vmem:[%s203] sm:$0xff] %vm275, %v265
        %277 = vst.msk [vmem:[%s207] sm:$0xff] %vm275, %v270
      $region32: #{iid_mapping_bn_forward.2} parent=27 // pred_fallthru
        _
      %p278 = scmp.ne.s32.totalorder %s20, 0
      // Predicated region
      $region33: #{iid_mapping_bn_forward.2} parent=27 // pred_check
        %p279 = pneg %p278
      $region34: #{iid_mapping_bn_forward.2} parent=27 // pred_check_branch
        %281 = sbr.rel (%p279) target = $region36
      $region35: #{iid_mapping_bn_forward.2} parent=27 // pred_region
        %v282 = vld [vmem:[%s203] sm:$0xff]
        %v283 = vadd.f32 %v282, %v265
        %vm284 = vcmask 7168
        %285 = vst.msk [vmem:[%s203] sm:$0xff] %vm284, %v283
        %v286 = vld [vmem:[%s207] sm:$0xff]
        %v287 = vadd.f32 %v286, %v270
        %288 = vst.msk [vmem:[%s207] sm:$0xff] %vm284, %v287
      $region36: #{iid_mapping_bn_forward.2} parent=27 // pred_fallthru
        _
      %p289 = scmp.lt.s32.totalorder %s19, 1
      %s290 = scalar_select %p289, %s19, 1
      %s291 = smul.addr %s290, 8
      %s292 = scalar_lea.vmem %s2, %s291
      %p293 = scmp.lt.s32.totalorder %s19, 1
      %s294 = scalar_select %p293, %s19, 1
      %s295 = smul.addr %s294, 8
      %s296 = scalar_lea.vmem %s3, %s295
      // Predicated region
      $region37: #{iid_mapping_bn_forward.2} parent=27 // pred_check
        %p297 = pneg %p94
      $region38: #{iid_mapping_bn_forward.2} parent=27 // pred_check_branch
        %299 = sbr.rel (%p297) target = $region40
      $region39: #{iid_mapping_bn_forward.2} parent=27 // pred_region
        _
      $region40: #{iid_mapping_bn_forward.2} parent=27 // pred_fallthru
        _
      // Predicated region
      $region41: #{iid_mapping_bn_forward.2} parent=27 // pred_check
        %p300 = pneg %p120
      $region42: #{iid_mapping_bn_forward.2} parent=27 // pred_check_branch
        %302 = sbr.rel (%p300) target = $region44
      $region43: #{iid_mapping_bn_forward.2} parent=27 // pred_region
        _
      $region44: #{iid_mapping_bn_forward.2} parent=27 // pred_fallthru
        _
    $region28: #{iid_mapping_bn_forward.2} parent=5 // pred_fallthru
      _
    %p303 = scmp.le.s32.totalorder 2, %s10
    // Predicated region
    $region45: #{iid_mapping_bn_forward.2} parent=5 // pred_check
      %p304 = pneg %p303
    $region46: #{iid_mapping_bn_forward.2} parent=5 // pred_check_branch
      %306 = sbr.rel (%p304) target = $region48
    $region47: #{iid_mapping_bn_forward.2} parent=5 // pred_region
      %s307 = ssub.s32 %s10, 2
      // Predicated region
      $region49: #{iid_mapping_bn_forward.2} parent=47 // pred_check
        %p308 = pneg %p100
      $region50: #{iid_mapping_bn_forward.2} parent=47 // pred_check_branch
        %310 = sbr.rel (%p308) target = $region52
      $region51: #{iid_mapping_bn_forward.2} parent=47 // pred_region
        %p311 = scmp.lt.s32.totalorder %s21, 1
        %s312 = scalar_select %p311, %s21, 1
        %s313 = smul.addr %s312, 8
        %s314 = scalar_lea.vmem %s2, %s313
      $region52: #{iid_mapping_bn_forward.2} parent=47 // pred_fallthru
        _
      // Predicated region
      $region53: #{iid_mapping_bn_forward.2} parent=47 // pred_check
        %p315 = pneg %p126
      $region54: #{iid_mapping_bn_forward.2} parent=47 // pred_check_branch
        %317 = sbr.rel (%p315) target = $region56
      $region55: #{iid_mapping_bn_forward.2} parent=47 // pred_region
        %p318 = scmp.lt.s32.totalorder %s21, 1
        %s319 = scalar_select %p318, %s21, 1
        %s320 = smul.addr %s319, 8
        %s321 = scalar_lea.vmem %s3, %s320
      $region56: #{iid_mapping_bn_forward.2} parent=47 // pred_fallthru
        _
    $region48: #{iid_mapping_bn_forward.2} parent=5 // pred_fallthru
      _
  $region6: #{iid_mapping_bn_forward.2} parent=0 // loop_footer
    %s14 = sadd.s32 1, %s10
  $region7: #{iid_mapping_bn_forward.2} parent=0 // loop_footer_branch
    %9 = sbr.rel target = $region3
  $region8: #{iid_mapping_bn_forward.2} parent=0 // loop_exit
    _

// kernel: iid_mapping_bn_forward.3
$region0: #{iid_mapping_bn_forward.3}
  #allocation0 [shape = 'u32[]', space=smem, size = 0x4, offset = 0x4, fixed_abs, tag = 'smem constant byte address 0x4 - core index']
  #allocation1 [shape = 'u32[72,128]{1,0:T(1,128)}', space=vmem, size = 0x9000, scoped, tag = 'internal scratch']
  %s0 = inlined_call_operand.vmem [shape: f32[2,4,256], index: 0, kind: input, shape index: {}]
  %s1 = inlined_call_operand.vmem [shape: f32[8,4], index: 1, kind: input, shape index: {}]
  %s2 = inlined_call_operand.vmem [shape: f32[8,1], index: 2, kind: input, shape index: {}]
  %s3 = inlined_call_operand.vmem [shape: f32[2,8,256], index: 3, kind: output, shape index: {}]
  %s4 = sld [smem:[#allocation0]]
  $region45: #{iid_mapping_bn_forward.3} parent=0
    _
  %s6 = ssub.s32 1, %s4
  %s7 = scalar_select 0, %s6, %s4
  loop: start=0, step=1, limit=4
  $region2: #{iid_mapping_bn_forward.3} parent=0 // loop_pre_header
    _
  $region3: #{iid_mapping_bn_forward.3} parent=0 // loop_header
    %s9 = sphi 0, %s13
    %p10 = scmp.ge.s32.totalorder %s9, 4
    %s16 = sphi 0, %s28
    %s17 = sphi 0, %s24
    %s18 = sphi 0, %s16
    %s19 = sphi 0, %s17
    %s20 = sphi 0, %s18
    %s21 = sphi 0, %s19
    %s33 = sphi 0, %s35
    %s36 = sphi 0, %s33
    %s37 = sphi 0, %s36
    %s53 = sphi 0, %s37
    %s57 = sphi 0, %s57
    %s59 = sphi 0, %s57
    %s60 = sphi 0, %s59
    %s74 = sphi 0, %s60
    %s78 = sphi 0, %s78
    %s80 = sphi 0, %s78
    %s81 = sphi 0, %s80
    %s95 = sphi 0, %s81
    %s103 = sphi 0, %s105
    %s106 = sphi 0, %s103
    %s107 = sphi 0, %s106
    %s123 = sphi 0, %s107
  $region4: #{iid_mapping_bn_forward.3} parent=0 // loop_header_branch
    %12 = sbr.rel (%p10) target = $region8
  $region5: #{iid_mapping_bn_forward.3} parent=0 // loop_body
    %s14 = ssub.s32 %s9, 1
    %s15 = ssub.s32 %s9, 2
    %s22 = sadd.s32 1, %s17
    %p23 = scmp.ge.s32.totalorder %s22, 1
    %s24 = scalar_select %p23, 0, %s22
    %s25 = sadd.s32 1, %s16
    %s26 = scalar_select %p23, %s25, %s16
    %p27 = scmp.ge.s32.totalorder %s26, 2
    %s28 = scalar_select %p27, 0, %s26
    %s29 = ssub.s32 %s16, %s28
    %s30 = ssub.s32 %s17, %s24
    %s31 = sor.u32 %s29, %s30
    %p32 = scmp.eq.s32.totalorder %s31, 0
    %s34 = sadd.s32 %s33, 1
    %s35 = scalar_select %p32, %s33, %s34
    %p38 = pneg %p32
    %p39 = scmp.eq.s32.totalorder %s9, 1
    %p40 = por %p38, %p39
    %p41 = scmp.ne.s32.totalorder %s33, %s36
    %p42 = scmp.eq.s32.totalorder %s9, 0
    %p43 = por %p41, %p42
    %p44 = scmp.ne.s32.totalorder %s33, %s36
    %p45 = scmp.eq.s32.totalorder %s14, 1
    %p46 = por %p44, %p45
    %p47 = scmp.ne.s32.totalorder %s36, %s37
    %p48 = scmp.eq.s32.totalorder %s14, 0
    %p49 = por %p47, %p48
    %p50 = scmp.ne.s32.totalorder %s36, %s37
    %p51 = scmp.eq.s32.totalorder %s15, 1
    %p52 = por %p50, %p51
    %p54 = scmp.ne.s32.totalorder %s37, %s53
    %p55 = scmp.eq.s32.totalorder %s15, 0
    %p56 = por %p54, %p55
    %s58 = sadd.s32 %s57, 1
    %p61 = scmp.eq.s32.totalorder %s9, 1
    %p62 = scmp.ne.s32.totalorder %s57, %s59
    %p63 = scmp.eq.s32.totalorder %s9, 0
    %p64 = por %p62, %p63
    %p65 = scmp.ne.s32.totalorder %s57, %s59
    %p66 = scmp.eq.s32.totalorder %s14, 1
    %p67 = por %p65, %p66
    %p68 = scmp.ne.s32.totalorder %s59, %s60
    %p69 = scmp.eq.s32.totalorder %s14, 0
    %p70 = por %p68, %p69
    %p71 = scmp.ne.s32.totalorder %s59, %s60
    %p72 = scmp.eq.s32.totalorder %s15, 1
    %p73 = por %p71, %p72
    %p75 = scmp.ne.s32.totalorder %s60, %s74
    %p76 = scmp.eq.s32.totalorder %s15, 0
    %p77 = por %p75, %p76
    %s79 = sadd.s32 %s78, 1
    %p82 = scmp.eq.s32.totalorder %s9, 1
    %p83 = scmp.ne.s32.totalorder %s78, %s80
    %p84 = scmp.eq.s32.totalorder %s9, 0
    %p85 = por %p83, %p84
    %p86 = scmp.ne.s32.totalorder %s78, %s80
    %p87 = scmp.eq.s32.totalorder %s14, 1
    %p88 = por %p86, %p87
    %p89 = scmp.ne.s32.totalorder %s80, %s81
    %p90 = scmp.eq.s32.totalorder %s14, 0
    %p91 = por %p89, %p90
    %p92 = scmp.ne.s32.totalorder %s80, %s81
    %p93 = scmp.eq.s32.totalorder %s15, 1
    %p94 = por %p92, %p93
    %p96 = scmp.ne.s32.totalorder %s81, %s95
    %p97 = scmp.eq.s32.totalorder %s15, 0
    %p98 = por %p96, %p97
    %s99 = ssub.s32 %s16, %s28
    %s100 = ssub.s32 %s17, %s24
    %s101 = sor.u32 %s99, %s100
    %p102 = scmp.eq.s32.totalorder %s101, 0
    %s104 = sadd.s32 %s103, 1
    %s105 = scalar_select %p102, %s103, %s104
    %p108 = pneg %p102
    %p109 = scmp.eq.s32.totalorder %s9, 1
    %p110 = por %p108, %p109
    %p111 = scmp.ne.s32.totalorder %s103, %s106
    %p112 = scmp.eq.s32.totalorder %s9, 0
    %p113 = por %p111, %p112
    %p114 = scmp.ne.s32.totalorder %s103, %s106
    %p115 = scmp.eq.s32.totalorder %s14, 1
    %p116 = por %p114, %p115
    %p117 = scmp.ne.s32.totalorder %s106, %s107
    %p118 = scmp.eq.s32.totalorder %s14, 0
    %p119 = por %p117, %p118
    %p120 = scmp.ne.s32.totalorder %s106, %s107
    %p121 = scmp.eq.s32.totalorder %s15, 1
    %p122 = por %p120, %p121
    %p124 = scmp.ne.s32.totalorder %s107, %s123
    %p125 = scmp.eq.s32.totalorder %s15, 0
    %p126 = por %p124, %p125
    %p127 = scmp.le.s32.totalorder 1, %s9
    %p128 = scmp.lt.s32.totalorder %s9, 3
    %p129 = pnand %p127, %p128
    %p130 = pneg %p129
    // Predicated region
    $region9: #{iid_mapping_bn_forward.3} parent=5 // pred_check
      _
    $region10: #{iid_mapping_bn_forward.3} parent=5 // pred_check_branch
      %132 = sbr.rel (%p129) target = $region12
    $region11: #{iid_mapping_bn_forward.3} parent=5 // pred_region
      %s133 = ssub.s32 %s9, 1
      // Predicated region
      $region13: #{iid_mapping_bn_forward.3} parent=11 // pred_check
        %p134 = pneg %p70
      $region14: #{iid_mapping_bn_forward.3} parent=11 // pred_check_branch
        %136 = sbr.rel (%p134) target = $region16
      $region15: #{iid_mapping_bn_forward.3} parent=11 // pred_region
        _
      $region16: #{iid_mapping_bn_forward.3} parent=11 // pred_fallthru
        _
      // Predicated region
      $region17: #{iid_mapping_bn_forward.3} parent=11 // pred_check
        %p137 = pneg %p91
      $region18: #{iid_mapping_bn_forward.3} parent=11 // pred_check_branch
        %139 = sbr.rel (%p137) target = $region20
      $region19: #{iid_mapping_bn_forward.3} parent=11 // pred_region
        _
      $region20: #{iid_mapping_bn_forward.3} parent=11 // pred_fallthru
        _
    $region12: #{iid_mapping_bn_forward.3} parent=5 // pred_fallthru
      _
    %p140 = scmp.lt.s32.totalorder %s9, 2
    // Predicated region
    $region21: #{iid_mapping_bn_forward.3} parent=5 // pred_check
      %p141 = pneg %p140
    $region22: #{iid_mapping_bn_forward.3} parent=5 // pred_check_branch
      %143 = sbr.rel (%p141) target = $region24
    $region23: #{iid_mapping_bn_forward.3} parent=5 // pred_region
      // Predicated region
      $region25: #{iid_mapping_bn_forward.3} parent=23 // pred_check
        %p144 = pneg %p43
      $region26: #{iid_mapping_bn_forward.3} parent=23 // pred_check_branch
        %146 = sbr.rel (%p144) target = $region28
      $region27: #{iid_mapping_bn_forward.3} parent=23 // pred_region
        %s147 = smul.u32 2, %s17
        %p148 = scmp.lt.s32.totalorder %s16, 1
        %s149 = scalar_select %p148, %s16, 1
        %p150 = scmp.lt.s32.totalorder %s147, 1
        %s151 = scalar_select %p150, %s147, 1
        %s152 = smul.addr %s149, 2
        %s153 = sadd.s32 %s151, %s152
        %s154 = smul.addr %s153, 4
        %s155 = scalar_lea.vmem %s0, %s154
        %s156 = smul.u32 2, %s17
      $region28: #{iid_mapping_bn_forward.3} parent=23 // pred_fallthru
        _
    $region24: #{iid_mapping_bn_forward.3} parent=5 // pred_fallthru
      _
    %p157 = scmp.le.s32.totalorder 1, %s9
    %p158 = scmp.lt.s32.totalorder %s9, 3
    %p159 = pnand %p157, %p158
    %p160 = pneg %p159
    // Predicated region
    $region29: #{iid_mapping_bn_forward.3} parent=5 // pred_check
      _
    $region30: #{iid_mapping_bn_forward.3} parent=5 // pred_check_branch
      %162 = sbr.rel (%p159) target = $region32
    $region31: #{iid_mapping_bn_forward.3} parent=5 // pred_region
      %s163 = ssub.s32 %s9, 1
      %s164 = smul.u32 2, %s19
      %p165 = scmp.lt.s32.totalorder %s18, 1
      %s166 = scalar_select %p165, %s18, 1
      %p167 = scmp.lt.s32.totalorder %s164, 1
      %s168 = scalar_select %p167, %s164, 1
      %s169 = smul.addr %s166, 2
      %s170 = sadd.s32 %s168, %s169
      %s171 = smul.addr %s170, 4
      %s172 = scalar_lea.vmem %s0, %s171
      %p173 = pneg %p49
      %p174 = pneg %p46
      %p175 = pneg %p70
      %p176 = pneg %p67
      %p177 = pneg %p91
      %p178 = pneg %p88
      %p179 = pneg %p119
      %p180 = pneg %p116
      %s181 = smul.u32 2, %s19
      %p182 = scmp.lt.s32.totalorder %s18, 1
      %s183 = scalar_select %p182, %s18, 1
      %p184 = scmp.lt.s32.totalorder %s181, 1
      %s185 = scalar_select %p184, %s181, 1
      %s186 = smul.addr %s183, 2
      %s187 = sadd.s32 %s185, %s186
      %s188 = smul.addr %s187, 8
      %s189 = scalar_lea.vmem %s3, %s188
      %s190 = smul.u32 2, %s19
      %p191 = scmp.lt.s32.totalorder %s18, 1
      %s192 = scalar_select %p191, %s18, 1
      %p193 = scmp.lt.s32.totalorder %s190, 1
      %s194 = scalar_select %p193, %s190, 1
      %s195 = smul.addr %s192, 2
      %s196 = sadd.s32 %s194, %s195
      %s197 = smul.addr %s196, 4
      %s198 = scalar_lea.vmem %s0, %s197
      %s199 = smul.u32 2, %s19
      %s200 = smul.u32 2, %s19
      %p201 = scmp.lt.s32.totalorder %s18, 1
      %s202 = scalar_select %p201, %s18, 1
      %p203 = scmp.lt.s32.totalorder %s200, 1
      %s204 = scalar_select %p203, %s200, 1
      %s205 = smul.addr %s202, 2
      %s206 = sadd.s32 %s204, %s205
      %s207 = smul.addr %s206, 8
      %s208 = scalar_lea.vmem %s3, %s207
      %s209 = smul.u32 2, %s19
      %v210 = vld [vmem:[%s1] sm:$0xff]
      %v211 = vld [vmem:[%s198] sm:$0xff]
      %v212 = vld [vmem:[%s2] sm:$0xff]
      %214 = vset.pattern.permute.xlu0 0
      %215 = vperm.xlu0 %214, %v212
      %v216 = vpop.permute.xlu0 %215
      %219 = vst [vmem:[#allocation1] ss:$2 sm:$0xff] %v211
      %v220 = vld.sshfl [vmem:[#allocation1] sm:$0xff pattern:$0x75316420]
      %v221 = vld.sshfl [vmem:[#allocation1 + $0x8] sm:$0xff pattern:$0x75316420]
      %vm222 = vcmask 31744
      %v224 = vsel %vm222, %v210, 0
      %vm226 = vcmask 1043456
      %v227 = vsel %vm226, %v220, 0
      %v229 = vsel %vm226, %v221, 0
      %231 = vmatpush.msra.mxu0 0.0
      %232 = vmatpush.msra.mxu0 0.0
      %233 = vmatpush.msra.mxu0 0.0
      %234 = vmatpush.msra.mxu0 0.0
      %235 = vmatpush.msra.mxu0 0.0
      %236 = vmatpush.msra.mxu0 0.0
      %237 = vmatpush.msra.mxu0 0.0
      %238 = vmatpush.msra.mxu0 0.0
      %239 = vmatpush.msra.mxu0 0.0
      %240 = vmatpush.msra.mxu0 0.0
      %241 = vmatpush.msra.mxu0 0.0
      %242 = vmatpush.msra.mxu0 0.0
      %243 = vmatpush.msra.mxu0 0.0
      %244 = vmatpush.msra.mxu0 0.0
      %245 = vmatpush.msra.mxu0 0.0
      %246 = vmatpush.msra.mxu0 %v227
      %247 = vmatmul.f32.gmra.mxu0 %v224
      %v248 = vpop.f32.mrf.mxu0
      %v249 = vadd.f32 %v216, %v248
      %250 = vdwg.mxu0
      %251 = vmatpush.msra.mxu0 0.0
      %252 = vmatpush.msra.mxu0 0.0
      %253 = vmatpush.msra.mxu0 0.0
      %254 = vmatpush.msra.mxu0 0.0
      %255 = vmatpush.msra.mxu0 0.0
      %256 = vmatpush.msra.mxu0 0.0
      %257 = vmatpush.msra.mxu0 0.0
      %258 = vmatpush.msra.mxu0 0.0
      %259 = vmatpush.msra.mxu0 0.0
      %260 = vmatpush.msra.mxu0 0.0
      %261 = vmatpush.msra.mxu0 0.0
      %262 = vmatpush.msra.mxu0 0.0
      %263 = vmatpush.msra.mxu0 0.0
      %264 = vmatpush.msra.mxu0 0.0
      %265 = vmatpush.msra.mxu0 0.0
      %266 = vmatpush.msra.mxu0 %v229
      %267 = vmatmul.f32.gmra.mxu0 %v224
      %v268 = vpop.f32.mrf.mxu0
      %v269 = vadd.f32 %v216, %v268
      %270 = vdwg.mxu0
      %v271 = vmax.f32 %v249, 0.0
      %v272 = vmax.f32 %v269, 0.0
      %273 = vst [vmem:[%s208] sm:$0xff] %v271
      %274 = vst [vmem:[%s208 + $0x8] sm:$0xff] %v272
      %s275 = smul.u32 2, %s19
      %p276 = scmp.lt.s32.totalorder %s18, 1
      %s277 = scalar_select %p276, %s18, 1
      %p278 = scmp.lt.s32.totalorder %s275, 1
      %s279 = scalar_select %p278, %s275, 1
      %s280 = smul.addr %s277, 2
      %s281 = sadd.s32 %s279, %s280
      %s282 = smul.addr %s281, 8
      %s283 = scalar_lea.vmem %s3, %s282
      // Predicated region
      $region33: #{iid_mapping_bn_forward.3} parent=31 // pred_check
        %p284 = pneg %p116
      $region34: #{iid_mapping_bn_forward.3} parent=31 // pred_check_branch
        %286 = sbr.rel (%p284) target = $region36
      $region35: #{iid_mapping_bn_forward.3} parent=31 // pred_region
        %s287 = smul.u32 2, %s19
      $region36: #{iid_mapping_bn_forward.3} parent=31 // pred_fallthru
        _
    $region32: #{iid_mapping_bn_forward.3} parent=5 // pred_fallthru
      _
    %p288 = scmp.le.s32.totalorder 2, %s9
    // Predicated region
    $region37: #{iid_mapping_bn_forward.3} parent=5 // pred_check
      %p289 = pneg %p288
    $region38: #{iid_mapping_bn_forward.3} parent=5 // pred_check_branch
      %291 = sbr.rel (%p289) target = $region40
    $region39: #{iid_mapping_bn_forward.3} parent=5 // pred_region
      %s292 = ssub.s32 %s9, 2
      // Predicated region
      $region41: #{iid_mapping_bn_forward.3} parent=39 // pred_check
        %p293 = pneg %p122
      $region42: #{iid_mapping_bn_forward.3} parent=39 // pred_check_branch
        %295 = sbr.rel (%p293) target = $region44
      $region43: #{iid_mapping_bn_forward.3} parent=39 // pred_region
        %s296 = smul.u32 2, %s21
        %p297 = scmp.lt.s32.totalorder %s20, 1
        %s298 = scalar_select %p297, %s20, 1
        %p299 = scmp.lt.s32.totalorder %s296, 1
        %s300 = scalar_select %p299, %s296, 1
        %s301 = smul.addr %s298, 2
        %s302 = sadd.s32 %s300, %s301
        %s303 = smul.addr %s302, 8
        %s304 = scalar_lea.vmem %s3, %s303
      $region44: #{iid_mapping_bn_forward.3} parent=39 // pred_fallthru
        _
    $region40: #{iid_mapping_bn_forward.3} parent=5 // pred_fallthru
      _
  $region6: #{iid_mapping_bn_forward.3} parent=0 // loop_footer
    %s13 = sadd.s32 1, %s9
  $region7: #{iid_mapping_bn_forward.3} parent=0 // loop_footer_branch
    %8 = sbr.rel target = $region3
  $region8: #{iid_mapping_bn_forward.3} parent=0 // loop_exit
    _

</llo_original>
